<compile_context>
chip_gen: v6e
topology: v6e:2x2x1
jax: 0.10.0
libtpu: 0.0.40
codegen_flags: <defaults>
</compile_context>

<pallas_src>
import functools

import jax
import jax.numpy as jnp
from jax import lax
from jax.experimental import pallas as pl
from jax.experimental.pallas import tpu as pltpu


def _round_up(x: int, m: int) -> int:
    return ((x + m - 1) // m) * m


def _pad_to(x, shape):
    if tuple(x.shape) == tuple(shape):
        return x
    pads = [(0, t - s) for t, s in zip(shape, x.shape)]
    return jnp.pad(x, pads)


def _device_config():
    """Per-generation tiling / VMEM budget heuristics."""
    kind = ""
    try:
        kind = jax.devices()[0].device_kind.lower()
    except Exception:
        pass
    vmem_bytes = None
    try:
        vmem_bytes = int(pltpu.get_tpu_info().vmem_capacity_bytes)
    except Exception:
        pass
    small_vmem = ("v7" in kind) or (vmem_bytes is not None and vmem_bytes <= 80 * 2**20)
    two_cores = any(tag in kind for tag in ("v7", "v4", "v5p"))
    if small_vmem:                    # v7x: 64 MiB VMEM per TensorCore
        block_target = 3 << 20
        vmem_cap = 40 << 20
    else:                             # v5e / v6e: 128 MiB VMEM
        block_target = 12 << 20
        vmem_cap = 80 << 20
    return block_target, vmem_cap, small_vmem, two_cores


def _choose_tq(Lq: int, Lkp: int, small_vmem: bool) -> int:
    if Lq < 128:
        # Tiny Lq: K/V-load bound anyway, don't over-pad the query axis.
        return max(32, _round_up(Lq, 32))
    if small_vmem:
        cap = 128 if Lkp > 2048 else 256
    else:
        cap = 512 if Lkp <= 2048 else 256
    return min(cap, _round_up(Lq, 128))


def _sdpa_kernel(q_ref, k_ref, v_ref, mask_ref, ctx_ref, attn_ref, *,
                 inv_sqrt_dk, lk_valid, mxu_dtype, approx_recip):
    # Fold 1/sqrt(d_k) into Q (G*TQ*d_k multiply, cheaper than scaling scores).
    q = q_ref[...] * inv_sqrt_dk          # (G, TQ,  d_k_pad) f32
    k = k_ref[...]                        # (G, Lkp, d_k_pad) f32
    if mxu_dtype is not None:
        q = q.astype(mxu_dtype)
        k = k.astype(mxu_dtype)

    # scores = (Q / sqrt(d_k)) @ K^T ; K "transpose" via contracting dims.
    scores = lax.dot_general(
        q, k,
        dimension_numbers=(((2,), (2,)), ((0,), (0,))),
        preferred_element_type=jnp.float32,
    )                                     # (G, TQ, Lkp) f32

    # masked_fill_(attn_mask, -1e9): replace (not add), matching torch.
    scores = jnp.where(mask_ref[...] != 0, jnp.float32(-1e9), scores)

    # Padded key columns contribute exactly zero probability.
    if lk_valid < scores.shape[-1]:
        col = lax.broadcasted_iota(jnp.int32, scores.shape, 2)
        scores = jnp.where(col >= lk_valid, jnp.float32(-jnp.inf), scores)

    # Numerically stable softmax in fp32.
    mx = jnp.max(scores, axis=-1, keepdims=True)
    e = jnp.exp(scores - mx)
    denom = jnp.sum(e, axis=-1, keepdims=True)
    attn = e * pl.reciprocal(denom, approx=approx_recip)

    p = attn
    v = v_ref[...]                        # (G, Lkp, d_v_pad) f32
    if mxu_dtype is not None:
        p = p.astype(mxu_dtype)
        v = v.astype(mxu_dtype)

    # context = attn @ V
    ctx = lax.dot_general(
        p, v,
        dimension_numbers=(((2,), (1,)), ((0,), (0,))),
        preferred_element_type=jnp.float32,
    )                                     # (G, TQ, d_v_pad) f32

    attn_ref[...] = attn.astype(attn_ref.dtype)
    ctx_ref[...] = ctx.astype(ctx_ref.dtype)


def scaled_dot_product_attention(Q, K, V, attn_mask, d_k, *, use_bf16_mxu=True):
    """Pallas TPU implementation of ScaledDotProductAttention.forward.

    Returns (context [B,H,Lq,d_v], attn [B,H,Lq,Lk]) in float32.
    """
    B, H, Lq, dk = Q.shape
    Lk = K.shape[2]
    dv = V.shape[3]
    BH = B * H
    f32 = jnp.float32

    block_target, vmem_cap, small_vmem, two_cores = _device_config()

    # ---- lane-dense padding targets ----------------------------------------
    dkp = _round_up(dk, 128)
    dvp = _round_up(dv, 128)
    Lkp = _round_up(Lk, 128)
    TQ = _choose_tq(Lq, Lkp, small_vmem)
    Lqp = _round_up(Lq, TQ)

    # ---- heads per grid step, accounting for double-buffered blocks and the
    # in-kernel softmax temporaries (scores / exp / attn) ---------------------
    per_g = (
        2 * 4 * (TQ * dkp + Lkp * dkp + Lkp * dvp)   # double-buffered f32 inputs
        + 2 * 1 * (TQ * Lkp)                          # double-buffered int8 mask
        + 2 * 4 * (TQ * dvp + TQ * Lkp)               # double-buffered f32 outputs
        + 3 * 4 * (TQ * Lkp)                          # softmax temporaries
    )
    G = int(max(1, min(BH, block_target // per_g)))
    # On 2-TensorCore chips make sure a parallel grid axis has >= 2 steps.
    if two_cores and (Lqp // TQ) < 2 and BH >= 2:
        G = max(1, min(G, (BH + 1) // 2))
    BHp = _round_up(BH, G)
    vmem_limit = int(min(vmem_cap, max(16 << 20, (G * per_g * 3) // 2)))

    # ---- build (possibly padded) operands; skipped when already aligned -----
    q = _pad_to(Q.reshape(BH, Lq, dk).astype(f32), (BHp, Lqp, dkp))
    k = _pad_to(K.reshape(BH, Lk, dk).astype(f32), (BHp, Lkp, dkp))
    v = _pad_to(V.reshape(BH, Lk, dv).astype(f32), (BHp, Lkp, dvp))
    mask = _pad_to(attn_mask.reshape(BH, Lq, Lk).astype(jnp.int8), (BHp, Lqp, Lkp))

    kernel = functools.partial(
        _sdpa_kernel,
        inv_sqrt_dk=float(1.0 / (d_k ** 0.5)),
        lk_valid=Lk,
        mxu_dtype=jnp.bfloat16 if use_bf16_mxu else None,
        approx_recip=bool(use_bf16_mxu),
    )

    grid = (BHp // G, Lqp // TQ)

    ctx, attn = pl.pallas_call(
        kernel,
        out_shape=(
            jax.ShapeDtypeStruct((BHp, Lqp, dvp), f32),
            jax.ShapeDtypeStruct((BHp, Lqp, Lkp), f32),
        ),
        grid_spec=pltpu.PrefetchScalarGridSpec(
            num_scalar_prefetch=0,
            grid=grid,
            in_specs=[
                pl.BlockSpec((G, TQ, dkp), lambda i, j: (i, j, 0)),    # Q
                pl.BlockSpec((G, Lkp, dkp), lambda i, j: (i, 0, 0)),   # K
                pl.BlockSpec((G, Lkp, dvp), lambda i, j: (i, 0, 0)),   # V
                pl.BlockSpec((G, TQ, Lkp), lambda i, j: (i, j, 0)),    # mask (int8)
            ],
            out_specs=(
                pl.BlockSpec((G, TQ, dvp), lambda i, j: (i, j, 0)),    # context
                pl.BlockSpec((G, TQ, Lkp), lambda i, j: (i, j, 0)),    # attn
            ),
        ),
        compiler_params=pltpu.CompilerParams(
            dimension_semantics=("parallel", "parallel"),
            vmem_limit_bytes=vmem_limit,
        ),
    )(q, k, v, mask)

    context = ctx[:BH, :Lq, :dv].reshape(B, H, Lq, dv)
    attn_out = attn[:BH, :Lq, :Lk].reshape(B, H, Lq, Lk)
    return context, attn_out


def _reference(Q, K, V, attn_mask, d_k):
    scores = jnp.einsum("bhqd,bhkd->bhqk", Q, K) / jnp.sqrt(jnp.float32(d_k))
    scores = jnp.where(attn_mask, jnp.float32(-1e9), scores)
    attn = jax.nn.softmax(scores, axis=-1)
    context = jnp.einsum("bhqk,bhkd->bhqd", attn, V)
    return context, attn


if __name__ == "__main__":
    B, H, Lq, Lk, d_k, d_v = 2, 2, 8, 8, 32, 32

    key = jax.random.PRNGKey(0)
    kq, kk, kv, km = jax.random.split(key, 4)
    Q = jax.random.normal(kq, (B, H, Lq, d_k), dtype=jnp.float32)
    K = jax.random.normal(kk, (B, H, Lk, d_k), dtype=jnp.float32)
    V = jax.random.normal(kv, (B, H, Lk, d_v), dtype=jnp.float32)
    # Boolean mask, True => masked out (same semantics as masked_fill_).
    attn_mask = jax.random.bernoulli(km, p=0.25, shape=(B, H, Lq, Lk))

    ctx_ref, attn_ref = _reference(Q, K, V, attn_mask, d_k)

    # Default fast path: bf16 MXU operands, f32 accumulation/softmax.
    context_bf, attn_bf = scaled_dot_product_attention(Q, K, V, attn_mask, d_k)
    jax.block_until_ready((context_bf, attn_bf))
    assert bool(jnp.all(jnp.isfinite(context_bf)))
    assert jnp.allclose(context_bf, ctx_ref, atol=1e-1, rtol=1e-1)
    assert jnp.allclose(attn_bf, attn_ref, atol=1e-1, rtol=1e-1)

    # fp32 parity path (matches the torch fp32 reference closely).
    context, attn = scaled_dot_product_attention(
        Q, K, V, attn_mask, d_k, use_bf16_mxu=False)
    jax.block_until_ready((context, attn))
    assert jnp.allclose(context, ctx_ref, atol=1e-4, rtol=1e-4)
    assert jnp.allclose(attn, attn_ref, atol=1e-5, rtol=1e-5)

    print("KERNEL_OK")
</pallas_src>

<mosaic_0001>
module attributes {stable_mosaic.version = 11 : i64} {
  func.func @_sdpa_kernel(%arg0: i32, %arg1: i32, %arg2: memref<4x32x128xf32, #tpu.memory_space<vmem>>, %arg3: memref<4x128x128xf32, #tpu.memory_space<vmem>>, %arg4: memref<4x128x128xf32, #tpu.memory_space<vmem>>, %arg5: memref<4x32x128xi8, #tpu.memory_space<vmem>>, %arg6: memref<4x32x128xf32, #tpu.memory_space<vmem>>, %arg7: memref<4x32x128xf32, #tpu.memory_space<vmem>>) attributes {dimension_semantics = [#tpu.dimension_semantics<parallel>, #tpu.dimension_semantics<parallel>], iteration_bounds = array<i64: 1, 1>, scalar_prefetch = 0 : i64, scratch_operands = 0 : i64, tpu.core_type = #tpu.core_type<tc>, window_params = [{transform_indices = @transform_0, window_bounds = array<i64: 4, 32, 128>}, {transform_indices = @transform_1, window_bounds = array<i64: 4, 128, 128>}, {transform_indices = @transform_2, window_bounds = array<i64: 4, 128, 128>}, {transform_indices = @transform_3, window_bounds = array<i64: 4, 32, 128>}, {transform_indices = @transform_4, window_bounds = array<i64: 4, 32, 128>}, {transform_indices = @transform_5, window_bounds = array<i64: 4, 32, 128>}]} {
    %c0 = arith.constant 0 : index
    %c0_0 = arith.constant 0 : index
    %c0_1 = arith.constant 0 : index
    %0 = vector.load %arg2[%c0, %c0_0, %c0_1] : memref<4x32x128xf32, #tpu.memory_space<vmem>>, vector<4x32x128xf32>
    %cst = arith.constant 0.176776692 : f32
    %1 = vector.broadcast %cst : f32 to vector<4x32x128xf32>
    %2 = arith.mulf %0, %1 : vector<4x32x128xf32>
    %c0_2 = arith.constant 0 : index
    %c0_3 = arith.constant 0 : index
    %c0_4 = arith.constant 0 : index
    %3 = vector.load %arg3[%c0_2, %c0_3, %c0_4] : memref<4x128x128xf32, #tpu.memory_space<vmem>>, vector<4x128x128xf32>
    %4 = arith.truncf %2 : vector<4x32x128xf32> to vector<4x32x128xbf16>
    %5 = arith.truncf %3 : vector<4x128x128xf32> to vector<4x128x128xbf16>
    %cst_5 = arith.constant dense<0.000000e+00> : vector<4x32x128xf32>
    %6 = tpu.matmul %4, %5, %cst_5 {dimension_numbers = #tpu.dot_dimension_numbers<[2], [2], [1], [1], [0, 0, 0, 1, 1, 1], [0], [0]>} : vector<4x32x128xbf16>, vector<4x128x128xbf16>, vector<4x32x128xf32> -> vector<4x32x128xf32>
    %c0_6 = arith.constant 0 : index
    %c0_7 = arith.constant 0 : index
    %c0_8 = arith.constant 0 : index
    %7 = vector.load %arg5[%c0_6, %c0_7, %c0_8] : memref<4x32x128xi8, #tpu.memory_space<vmem>>, vector<4x32x128xi8>
    %c0_i8 = arith.constant 0 : i8
    %8 = vector.broadcast %c0_i8 : i8 to vector<4x32x128xi8>
    %9 = arith.cmpi ne, %7, %8 : vector<4x32x128xi8>
    %cst_9 = arith.constant -1.000000e+09 : f32
    %10 = vector.broadcast %cst_9 : f32 to vector<4x32x128xf32>
    %11 = arith.select %9, %10, %6 : vector<4x32x128xi1>, vector<4x32x128xf32>
    %12 = tpu.iota {dimensions = array<i32: 2>} : vector<4x32x128xi32>
    %c8_i32 = arith.constant 8 : i32
    %13 = vector.broadcast %c8_i32 : i32 to vector<4x32x128xi32>
    %14 = arith.cmpi sge, %12, %13 : vector<4x32x128xi32>
    %cst_10 = arith.constant 0xFF800000 : f32
    %15 = vector.broadcast %cst_10 : f32 to vector<4x32x128xf32>
    %16 = arith.select %14, %15, %11 : vector<4x32x128xi1>, vector<4x32x128xf32>
    %cst_11 = arith.constant dense<0xFF800000> : vector<4x32xf32>
    %17 = vector.multi_reduction <maximumf>, %16, %cst_11 [2] : vector<4x32x128xf32> to vector<4x32xf32>
    %18 = vector.shape_cast %17 : vector<4x32xf32> to vector<4x32x1xf32>
    %19 = vector.broadcast %18 : vector<4x32x1xf32> to vector<4x32x128xf32>
    %20 = arith.subf %16, %19 : vector<4x32x128xf32>
    %21 = math.exp %20 : vector<4x32x128xf32>
    %cst_12 = arith.constant dense<0.000000e+00> : vector<4x32xf32>
    %22 = vector.multi_reduction <add>, %21, %cst_12 [2] : vector<4x32x128xf32> to vector<4x32xf32>
    %23 = vector.shape_cast %22 : vector<4x32xf32> to vector<4x32x1xf32>
    %24 = tpu.reciprocal %23 {approx = true} : vector<4x32x1xf32> -> vector<4x32x1xf32>
    %25 = vector.broadcast %24 : vector<4x32x1xf32> to vector<4x32x128xf32>
    %26 = arith.mulf %21, %25 : vector<4x32x128xf32>
    %c0_13 = arith.constant 0 : index
    %c0_14 = arith.constant 0 : index
    %c0_15 = arith.constant 0 : index
    %27 = vector.load %arg4[%c0_13, %c0_14, %c0_15] : memref<4x128x128xf32, #tpu.memory_space<vmem>>, vector<4x128x128xf32>
    %28 = arith.truncf %26 : vector<4x32x128xf32> to vector<4x32x128xbf16>
    %29 = arith.truncf %27 : vector<4x128x128xf32> to vector<4x128x128xbf16>
    %cst_16 = arith.constant dense<0.000000e+00> : vector<4x32x128xf32>
    %30 = tpu.matmul %28, %29, %cst_16 {dimension_numbers = #tpu.dot_dimension_numbers<[2], [1], [1], [2], [0, 0, 0, 1, 1, 2], [0], [0]>} : vector<4x32x128xbf16>, vector<4x128x128xbf16>, vector<4x32x128xf32> -> vector<4x32x128xf32>
    %c0_17 = arith.constant 0 : index
    %c0_18 = arith.constant 0 : index
    %c0_19 = arith.constant 0 : index
    %31 = vector.load %arg7[%c0_17, %c0_18, %c0_19] : memref<4x32x128xf32, #tpu.memory_space<vmem>>, vector<4x32x128xf32>
    tpu.vector_store %arg7[%c0_17, %c0_18, %c0_19], %26 {strides = array<i32>} : memref<4x32x128xf32, #tpu.memory_space<vmem>>, vector<4x32x128xf32>,
    %c0_20 = arith.constant 0 : index
    %c0_21 = arith.constant 0 : index
    %c0_22 = arith.constant 0 : index
    %32 = vector.load %arg6[%c0_20, %c0_21, %c0_22] : memref<4x32x128xf32, #tpu.memory_space<vmem>>, vector<4x32x128xf32>
    tpu.vector_store %arg6[%c0_20, %c0_21, %c0_22], %30 {strides = array<i32>} : memref<4x32x128xf32, #tpu.memory_space<vmem>>, vector<4x32x128xf32>,
    return
  }
  func.func @transform_0(%arg0: i32, %arg1: i32) -> (i32, i32, i32) {
    %c0_i32 = arith.constant 0 : i32
    %c0_i32_0 = arith.constant 0 : i32
    return %arg0, %arg1, %c0_i32 : i32, i32, i32
  }
  func.func @transform_1(%arg0: i32, %arg1: i32) -> (i32, i32, i32) {
    %c0_i32 = arith.constant 0 : i32
    %c0_i32_0 = arith.constant 0 : i32
    %c0_i32_1 = arith.constant 0 : i32
    return %arg0, %c0_i32, %c0_i32_0 : i32, i32, i32
  }
  func.func @transform_2(%arg0: i32, %arg1: i32) -> (i32, i32, i32) {
    %c0_i32 = arith.constant 0 : i32
    %c0_i32_0 = arith.constant 0 : i32
    %c0_i32_1 = arith.constant 0 : i32
    return %arg0, %c0_i32, %c0_i32_0 : i32, i32, i32
  }
  func.func @transform_3(%arg0: i32, %arg1: i32) -> (i32, i32, i32) {
    %c0_i32 = arith.constant 0 : i32
    %c0_i32_0 = arith.constant 0 : i32
    return %arg0, %arg1, %c0_i32 : i32, i32, i32
  }
  func.func @transform_4(%arg0: i32, %arg1: i32) -> (i32, i32, i32) {
    %c0_i32 = arith.constant 0 : i32
    %c0_i32_0 = arith.constant 0 : i32
    return %arg0, %arg1, %c0_i32 : i32, i32, i32
  }
  func.func @transform_5(%arg0: i32, %arg1: i32) -> (i32, i32, i32) {
    %c0_i32 = arith.constant 0 : i32
    %c0_i32_0 = arith.constant 0 : i32
    return %arg0, %arg1, %c0_i32 : i32, i32, i32
  }
}

</mosaic_0001>

<llo_original>
// kernel: tpu_custom_call.1
$region0: #{tpu_custom_call.1}
  #allocation0 [shape = 'u32[]', space=smem, size = 0x4, offset = 0x4, fixed_abs, tag = 'smem constant byte address 0x4 - core index']
  #allocation1 [shape = 'u32[144,128]{1,0:T(1,128)}', space=vmem, size = 0x12000, scoped, tag = 'internal scratch']
  %s0 = inlined_call_operand.hbm [shape: f32[4,32,128], index: 0, kind: input, shape index: {}]
  %s1 = inlined_call_operand.hbm [shape: f32[4,128,128], index: 1, kind: input, shape index: {}]
  %s2 = inlined_call_operand.hbm [shape: f32[4,128,128], index: 2, kind: input, shape index: {}]
  %s3 = inlined_call_operand.hbm [shape: s8[4,32,128], index: 3, kind: input, shape index: {}]
  %s4 = inlined_call_operand.hbm [shape: f32[4,32,128], index: 4, kind: output, shape index: {0}]
  %s5 = inlined_call_operand.hbm [shape: f32[4,32,128], index: 5, kind: output, shape index: {1}]
  %6 = xla_tuple %s4, %s5
  %s7 = sld [smem:[#allocation0]]
  $region50: #{tpu_custom_call.1} parent=0
    _
  %s9 = ssub.s32 1, %s7
  %s10 = scalar_select 0, %s9, %s7
  $region1: #{tpu_custom_call.1} parent=0
    #allocation2 [shape = 'u8[65536]{0}', space=vmem, size = 0x10000, scoped, tag = 'input window, operand 0, single buffered']
    #allocation3 [shape = 's32[1]{0}', space=sflag, size = 0x4, scoped, tag = 'scoped memory for tpu_custom_call.1']
    #allocation4 [shape = 's32[1]{0}', space=sflag, size = 0x4, scoped, tag = 'scoped memory for tpu_custom_call.1']
    #allocation5 [shape = 'u8[262144]{0}', space=vmem, size = 0x40000, scoped, tag = 'input window, operand 1, single buffered']
    #allocation6 [shape = 's32[1]{0}', space=sflag, size = 0x4, scoped, tag = 'scoped memory for tpu_custom_call.1']
    #allocation7 [shape = 'u8[262144]{0}', space=vmem, size = 0x40000, scoped, tag = 'input window, operand 2, single buffered']
    #allocation8 [shape = 'u8[16384]{0}', space=vmem, size = 0x4000, scoped, tag = 'input window, operand 3, single buffered']
    #allocation9 [shape = 's32[1]{0}', space=sflag, size = 0x4, scoped, tag = 'scoped memory for tpu_custom_call.1']
    #allocation10 [shape = 'u8[65536]{0}', space=vmem, size = 0x10000, scoped, tag = 'output window, operand 0, single buffered']
    #allocation11 [shape = 'u8[65536]{0}', space=vmem, size = 0x10000, scoped, tag = 'output window, operand 1, single buffered']
    #allocation12 [shape = 's32[1]{0}', space=sflag, size = 0x4, scoped, tag = 'scoped memory for tpu_custom_call.1']
    %11 = vsyncpa [#allocation3], 0
    %12 = vsyncpa [#allocation6], 0
    %13 = vsyncpa [#allocation9], 0
    %14 = vsyncpa [#allocation4], 0
    %15 = vsyncpa [#allocation12], 0
    // Predicated region
    $region2: #{tpu_custom_call.1} parent=1 // pred_check
      _
    $region3: #{tpu_custom_call.1} parent=1 // pred_check_branch
      %17 = sbr.rel (0) target = $region5
    $region4: #{tpu_custom_call.1} parent=1 // pred_region
      %s19 = ssub.s32 2048, 2048
      %20 = vsyncadd [#allocation3], %s19
      %s21 = sshll.u32 [#allocation2], 4
      %s22 = int_to_ptr.vmem [resolvable:$true] %s21
      %27 = dma.hbm_to_vmem [thread:$0]  %s0, 2048, %s22, [#allocation3], 128, 128, 8
    $region5: #{tpu_custom_call.1} parent=1 // pred_fallthru
      _
    // Predicated region
    $region6: #{tpu_custom_call.1} parent=1 // pred_check
      _
    $region7: #{tpu_custom_call.1} parent=1 // pred_check_branch
      %29 = sbr.rel (0) target = $region9
    $region8: #{tpu_custom_call.1} parent=1 // pred_region
      %s31 = ssub.s32 8192, 8192
      %32 = vsyncadd [#allocation6], %s31
      %s33 = sshll.u32 [#allocation5], 4
      %s34 = int_to_ptr.vmem [resolvable:$true] %s33
      %39 = dma.hbm_to_vmem [thread:$0]  %s1, 8192, %s34, [#allocation6], 128, 128, 8
    $region9: #{tpu_custom_call.1} parent=1 // pred_fallthru
      _
    // Predicated region
    $region10: #{tpu_custom_call.1} parent=1 // pred_check
      _
    $region11: #{tpu_custom_call.1} parent=1 // pred_check_branch
      %41 = sbr.rel (0) target = $region13
    $region12: #{tpu_custom_call.1} parent=1 // pred_region
      %s43 = ssub.s32 8192, 8192
      %44 = vsyncadd [#allocation6], %s43
      %s45 = sshll.u32 [#allocation7], 4
      %s46 = int_to_ptr.vmem [resolvable:$true] %s45
      %51 = dma.hbm_to_vmem [thread:$0]  %s2, 8192, %s46, [#allocation6], 128, 128, 8
    $region13: #{tpu_custom_call.1} parent=1 // pred_fallthru
      _
    // Predicated region
    $region14: #{tpu_custom_call.1} parent=1 // pred_check
      _
    $region15: #{tpu_custom_call.1} parent=1 // pred_check_branch
      %53 = sbr.rel (0) target = $region17
    $region16: #{tpu_custom_call.1} parent=1 // pred_region
      %s55 = ssub.s32 512, 512
      %56 = vsyncadd [#allocation9], %s55
      %s57 = sshll.u32 [#allocation8], 4
      %s58 = int_to_ptr.vmem [resolvable:$true] %s57
      %63 = dma.hbm_to_vmem [thread:$0]  %s3, 512, %s58, [#allocation9], 128, 128, 8
    $region17: #{tpu_custom_call.1} parent=1 // pred_fallthru
      _
    // Predicated region
    $region18: #{tpu_custom_call.1} parent=1 // pred_check
      _
    $region19: #{tpu_custom_call.1} parent=1 // pred_check_branch
      %65 = sbr.rel (0) target = $region21
    $region20: #{tpu_custom_call.1} parent=1 // pred_region
      %66 = dma.done [#allocation3], 2048
    $region21: #{tpu_custom_call.1} parent=1 // pred_fallthru
      _
    // Predicated region
    $region22: #{tpu_custom_call.1} parent=1 // pred_check
      _
    $region23: #{tpu_custom_call.1} parent=1 // pred_check_branch
      %68 = sbr.rel (0) target = $region25
    $region24: #{tpu_custom_call.1} parent=1 // pred_region
      %69 = dma.done [#allocation6], 8192
    $region25: #{tpu_custom_call.1} parent=1 // pred_fallthru
      _
    // Predicated region
    $region26: #{tpu_custom_call.1} parent=1 // pred_check
      _
    $region27: #{tpu_custom_call.1} parent=1 // pred_check_branch
      %71 = sbr.rel (0) target = $region29
    $region28: #{tpu_custom_call.1} parent=1 // pred_region
      %72 = dma.done [#allocation6], 8192
    $region29: #{tpu_custom_call.1} parent=1 // pred_fallthru
      _
    // Predicated region
    $region30: #{tpu_custom_call.1} parent=1 // pred_check
      _
    $region31: #{tpu_custom_call.1} parent=1 // pred_check_branch
      %74 = sbr.rel (0) target = $region33
    $region32: #{tpu_custom_call.1} parent=1 // pred_region
      %75 = dma.done [#allocation9], 512
    $region33: #{tpu_custom_call.1} parent=1 // pred_fallthru
      _
    %v79 = vld [vmem:[#allocation2] sm:$0xff]
    %v80 = vld [vmem:[#allocation2 + $0x8] sm:$0xff]
    %v81 = vld [vmem:[#allocation2 + $0x10] sm:$0xff]
    %v82 = vld [vmem:[#allocation2 + $0x18] sm:$0xff]
    %v83 = vld [vmem:[#allocation2 + $0x20] sm:$0xff]
    %v84 = vld [vmem:[#allocation2 + $0x28] sm:$0xff]
    %v85 = vld [vmem:[#allocation2 + $0x30] sm:$0xff]
    %v86 = vld [vmem:[#allocation2 + $0x38] sm:$0xff]
    %v87 = vld [vmem:[#allocation2 + $0x40] sm:$0xff]
    %v88 = vld [vmem:[#allocation2 + $0x48] sm:$0xff]
    %v89 = vld [vmem:[#allocation2 + $0x50] sm:$0xff]
    %v90 = vld [vmem:[#allocation2 + $0x58] sm:$0xff]
    %v91 = vld [vmem:[#allocation2 + $0x60] sm:$0xff]
    %v92 = vld [vmem:[#allocation2 + $0x68] sm:$0xff]
    %v93 = vld [vmem:[#allocation2 + $0x70] sm:$0xff]
    %v94 = vld [vmem:[#allocation2 + $0x78] sm:$0xff]
    %v95 = vmul.f32 %v79, 0.17677669
    %v96 = vmul.f32 %v80, 0.17677669
    %v97 = vmul.f32 %v81, 0.17677669
    %v98 = vmul.f32 %v82, 0.17677669
    %v99 = vmul.f32 %v83, 0.17677669
    %v100 = vmul.f32 %v84, 0.17677669
    %v101 = vmul.f32 %v85, 0.17677669
    %v102 = vmul.f32 %v86, 0.17677669
    %v103 = vmul.f32 %v87, 0.17677669
    %v104 = vmul.f32 %v88, 0.17677669
    %v105 = vmul.f32 %v89, 0.17677669
    %v106 = vmul.f32 %v90, 0.17677669
    %v107 = vmul.f32 %v91, 0.17677669
    %v108 = vmul.f32 %v92, 0.17677669
    %v109 = vmul.f32 %v93, 0.17677669
    %v110 = vmul.f32 %v94, 0.17677669
    %v111 = vld [vmem:[#allocation5] sm:$0xff]
    %v112 = vld [vmem:[#allocation5 + $0x8] sm:$0xff]
    %v113 = vld [vmem:[#allocation5 + $0x10] sm:$0xff]
    %v114 = vld [vmem:[#allocation5 + $0x18] sm:$0xff]
    %v115 = vld [vmem:[#allocation5 + $0x20] sm:$0xff]
    %v116 = vld [vmem:[#allocation5 + $0x28] sm:$0xff]
    %v117 = vld [vmem:[#allocation5 + $0x30] sm:$0xff]
    %v118 = vld [vmem:[#allocation5 + $0x38] sm:$0xff]
    %v119 = vld [vmem:[#allocation5 + $0x40] sm:$0xff]
    %v120 = vld [vmem:[#allocation5 + $0x48] sm:$0xff]
    %v121 = vld [vmem:[#allocation5 + $0x50] sm:$0xff]
    %v122 = vld [vmem:[#allocation5 + $0x58] sm:$0xff]
    %v123 = vld [vmem:[#allocation5 + $0x60] sm:$0xff]
    %v124 = vld [vmem:[#allocation5 + $0x68] sm:$0xff]
    %v125 = vld [vmem:[#allocation5 + $0x70] sm:$0xff]
    %v126 = vld [vmem:[#allocation5 + $0x78] sm:$0xff]
    %v127 = vld [vmem:[#allocation5 + $0x80] sm:$0xff]
    %v128 = vld [vmem:[#allocation5 + $0x88] sm:$0xff]
    %v129 = vld [vmem:[#allocation5 + $0x90] sm:$0xff]
    %v130 = vld [vmem:[#allocation5 + $0x98] sm:$0xff]
    %v131 = vld [vmem:[#allocation5 + $0xa0] sm:$0xff]
    %v132 = vld [vmem:[#allocation5 + $0xa8] sm:$0xff]
    %v133 = vld [vmem:[#allocation5 + $0xb0] sm:$0xff]
    %v134 = vld [vmem:[#allocation5 + $0xb8] sm:$0xff]
    %v135 = vld [vmem:[#allocation5 + $0xc0] sm:$0xff]
    %v136 = vld [vmem:[#allocation5 + $0xc8] sm:$0xff]
    %v137 = vld [vmem:[#allocation5 + $0xd0] sm:$0xff]
    %v138 = vld [vmem:[#allocation5 + $0xd8] sm:$0xff]
    %v139 = vld [vmem:[#allocation5 + $0xe0] sm:$0xff]
    %v140 = vld [vmem:[#allocation5 + $0xe8] sm:$0xff]
    %v141 = vld [vmem:[#allocation5 + $0xf0] sm:$0xff]
    %v142 = vld [vmem:[#allocation5 + $0xf8] sm:$0xff]
    %v143 = vld [vmem:[#allocation5 + $0x100] sm:$0xff]
    %v144 = vld [vmem:[#allocation5 + $0x108] sm:$0xff]
    %v145 = vld [vmem:[#allocation5 + $0x110] sm:$0xff]
    %v146 = vld [vmem:[#allocation5 + $0x118] sm:$0xff]
    %v147 = vld [vmem:[#allocation5 + $0x120] sm:$0xff]
    %v148 = vld [vmem:[#allocation5 + $0x128] sm:$0xff]
    %v149 = vld [vmem:[#allocation5 + $0x130] sm:$0xff]
    %v150 = vld [vmem:[#allocation5 + $0x138] sm:$0xff]
    %v151 = vld [vmem:[#allocation5 + $0x140] sm:$0xff]
    %v152 = vld [vmem:[#allocation5 + $0x148] sm:$0xff]
    %v153 = vld [vmem:[#allocation5 + $0x150] sm:$0xff]
    %v154 = vld [vmem:[#allocation5 + $0x158] sm:$0xff]
    %v155 = vld [vmem:[#allocation5 + $0x160] sm:$0xff]
    %v156 = vld [vmem:[#allocation5 + $0x168] sm:$0xff]
    %v157 = vld [vmem:[#allocation5 + $0x170] sm:$0xff]
    %v158 = vld [vmem:[#allocation5 + $0x178] sm:$0xff]
    %v159 = vld [vmem:[#allocation5 + $0x180] sm:$0xff]
    %v160 = vld [vmem:[#allocation5 + $0x188] sm:$0xff]
    %v161 = vld [vmem:[#allocation5 + $0x190] sm:$0xff]
    %v162 = vld [vmem:[#allocation5 + $0x198] sm:$0xff]
    %v163 = vld [vmem:[#allocation5 + $0x1a0] sm:$0xff]
    %v164 = vld [vmem:[#allocation5 + $0x1a8] sm:$0xff]
    %v165 = vld [vmem:[#allocation5 + $0x1b0] sm:$0xff]
    %v166 = vld [vmem:[#allocation5 + $0x1b8] sm:$0xff]
    %v167 = vld [vmem:[#allocation5 + $0x1c0] sm:$0xff]
    %v168 = vld [vmem:[#allocation5 + $0x1c8] sm:$0xff]
    %v169 = vld [vmem:[#allocation5 + $0x1d0] sm:$0xff]
    %v170 = vld [vmem:[#allocation5 + $0x1d8] sm:$0xff]
    %v171 = vld [vmem:[#allocation5 + $0x1e0] sm:$0xff]
    %v172 = vld [vmem:[#allocation5 + $0x1e8] sm:$0xff]
    %v173 = vld [vmem:[#allocation5 + $0x1f0] sm:$0xff]
    %v174 = vld [vmem:[#allocation5 + $0x1f8] sm:$0xff]
    %v175 = vpack.c.bf16 %v96, %v95
    %v176 = vpack.c.bf16 %v98, %v97
    %v177 = vpack.c.bf16 %v100, %v99
    %v178 = vpack.c.bf16 %v102, %v101
    %v179 = vpack.c.bf16 %v104, %v103
    %v180 = vpack.c.bf16 %v106, %v105
    %v181 = vpack.c.bf16 %v108, %v107
    %v182 = vpack.c.bf16 %v110, %v109
    %v183 = vpack.c.bf16 %v112, %v111
    %v184 = vpack.c.bf16 %v114, %v113
    %v185 = vpack.c.bf16 %v116, %v115
    %v186 = vpack.c.bf16 %v118, %v117
    %v187 = vpack.c.bf16 %v120, %v119
    %v188 = vpack.c.bf16 %v122, %v121
    %v189 = vpack.c.bf16 %v124, %v123
    %v190 = vpack.c.bf16 %v126, %v125
    %v191 = vpack.c.bf16 %v128, %v127
    %v192 = vpack.c.bf16 %v130, %v129
    %v193 = vpack.c.bf16 %v132, %v131
    %v194 = vpack.c.bf16 %v134, %v133
    %v195 = vpack.c.bf16 %v136, %v135
    %v196 = vpack.c.bf16 %v138, %v137
    %v197 = vpack.c.bf16 %v140, %v139
    %v198 = vpack.c.bf16 %v142, %v141
    %v199 = vpack.c.bf16 %v144, %v143
    %v200 = vpack.c.bf16 %v146, %v145
    %v201 = vpack.c.bf16 %v148, %v147
    %v202 = vpack.c.bf16 %v150, %v149
    %v203 = vpack.c.bf16 %v152, %v151
    %v204 = vpack.c.bf16 %v154, %v153
    %v205 = vpack.c.bf16 %v156, %v155
    %v206 = vpack.c.bf16 %v158, %v157
    %v207 = vpack.c.bf16 %v160, %v159
    %v208 = vpack.c.bf16 %v162, %v161
    %v209 = vpack.c.bf16 %v164, %v163
    %v210 = vpack.c.bf16 %v166, %v165
    %v211 = vpack.c.bf16 %v168, %v167
    %v212 = vpack.c.bf16 %v170, %v169
    %v213 = vpack.c.bf16 %v172, %v171
    %v214 = vpack.c.bf16 %v174, %v173
    %215 = vmatprep.subr.bf16.mxu0 0
    %216 = vmatpush1.bf16.xpose.msra.mxu0 %v190
    %217 = vmatprep.subr.bf16.mxu0 0
    %218 = vmatpush1.bf16.xpose.msra.mxu0 %v189
    %219 = vmatprep.subr.bf16.mxu0 0
    %220 = vmatpush1.bf16.xpose.msra.mxu0 %v188
    %221 = vmatprep.subr.bf16.mxu0 0
    %222 = vmatpush1.bf16.xpose.msra.mxu0 %v187
    %223 = vmatprep.subr.bf16.mxu0 0
    %224 = vmatpush1.bf16.xpose.msra.mxu0 %v186
    %225 = vmatprep.subr.bf16.mxu0 0
    %226 = vmatpush1.bf16.xpose.msra.mxu0 %v185
    %227 = vmatprep.subr.bf16.mxu0 0
    %228 = vmatpush1.bf16.xpose.msra.mxu0 %v184
    %229 = vmatprep.subr.bf16.mxu0 0
    %230 = vmatpush1.bf16.xpose.msra.mxu0 %v183
    %231 = vmatprep.subr.bf16.mxu0 0
    %232 = vmatpush2.bf16.xpose.msra.mxu0 0
    %233 = vmatprep.subr.bf16.mxu0 0
    %234 = vmatpush2.bf16.xpose.msra.mxu0 0
    %235 = vmatprep.subr.bf16.mxu0 0
    %236 = vmatpush2.bf16.xpose.msra.mxu0 0
    %237 = vmatprep.subr.bf16.mxu0 0
    %238 = vmatpush2.bf16.xpose.msra.mxu0 0
    %239 = vmatprep.subr.bf16.mxu0 0
    %240 = vmatpush2.bf16.xpose.msra.mxu0 0
    %241 = vmatprep.subr.bf16.mxu0 0
    %242 = vmatpush2.bf16.xpose.msra.mxu0 0
    %243 = vmatprep.subr.bf16.mxu0 0
    %244 = vmatpush2.bf16.xpose.msra.mxu0 0
    %245 = vmatprep.subr.bf16.mxu0 0
    %246 = vmatpush2.bf16.xpose.msra.mxu0 0
    %247 = vmatprep.mubr.bf16.mxu0 0
    %248 = vmatmul.mubr.bf16.gmra.mxu0 %v175
    %v249 = vpop.f32.mrf.mxu0
    %v250 = vadd.f32 0.0, %v249
    %v251 = vpop.f32.mrf.mxu0
    %v252 = vpop.f32.mrf.mxu0
    %v253 = vadd.f32 0.0, %v252
    %v254 = vpop.f32.mrf.mxu0
    %255 = vmatprep.mubr.bf16.mxu0 0
    %256 = vmatmul.mubr.bf16.gmra.mxu0 %v176
    %v257 = vpop.f32.mrf.mxu0
    %v258 = vadd.f32 0.0, %v257
    %v259 = vpop.f32.mrf.mxu0
    %v260 = vpop.f32.mrf.mxu0
    %v261 = vadd.f32 0.0, %v260
    %v262 = vpop.f32.mrf.mxu0
    %263 = vdwg.mxu0
    %264 = vmatprep.subr.bf16.mxu0 0
    %265 = vmatpush1.bf16.xpose.msra.mxu0 %v198
    %266 = vmatprep.subr.bf16.mxu0 0
    %267 = vmatpush1.bf16.xpose.msra.mxu0 %v197
    %268 = vmatprep.subr.bf16.mxu0 0
    %269 = vmatpush1.bf16.xpose.msra.mxu0 %v196
    %270 = vmatprep.subr.bf16.mxu0 0
    %271 = vmatpush1.bf16.xpose.msra.mxu0 %v195
    %272 = vmatprep.subr.bf16.mxu0 0
    %273 = vmatpush1.bf16.xpose.msra.mxu0 %v194
    %274 = vmatprep.subr.bf16.mxu0 0
    %275 = vmatpush1.bf16.xpose.msra.mxu0 %v193
    %276 = vmatprep.subr.bf16.mxu0 0
    %277 = vmatpush1.bf16.xpose.msra.mxu0 %v192
    %278 = vmatprep.subr.bf16.mxu0 0
    %279 = vmatpush1.bf16.xpose.msra.mxu0 %v191
    %280 = vmatprep.subr.bf16.mxu0 0
    %281 = vmatpush2.bf16.xpose.msra.mxu0 0
    %282 = vmatprep.subr.bf16.mxu0 0
    %283 = vmatpush2.bf16.xpose.msra.mxu0 0
    %284 = vmatprep.subr.bf16.mxu0 0
    %285 = vmatpush2.bf16.xpose.msra.mxu0 0
    %286 = vmatprep.subr.bf16.mxu0 0
    %287 = vmatpush2.bf16.xpose.msra.mxu0 0
    %288 = vmatprep.subr.bf16.mxu0 0
    %289 = vmatpush2.bf16.xpose.msra.mxu0 0
    %290 = vmatprep.subr.bf16.mxu0 0
    %291 = vmatpush2.bf16.xpose.msra.mxu0 0
    %292 = vmatprep.subr.bf16.mxu0 0
    %293 = vmatpush2.bf16.xpose.msra.mxu0 0
    %294 = vmatprep.subr.bf16.mxu0 0
    %295 = vmatpush2.bf16.xpose.msra.mxu0 0
    %296 = vmatprep.mubr.bf16.mxu0 0
    %297 = vmatmul.mubr.bf16.gmra.mxu0 %v177
    %v298 = vpop.f32.mrf.mxu0
    %v299 = vadd.f32 0.0, %v298
    %v300 = vpop.f32.mrf.mxu0
    %v301 = vpop.f32.mrf.mxu0
    %v302 = vadd.f32 0.0, %v301
    %v303 = vpop.f32.mrf.mxu0
    %304 = vmatprep.mubr.bf16.mxu0 0
    %305 = vmatmul.mubr.bf16.gmra.mxu0 %v178
    %v306 = vpop.f32.mrf.mxu0
    %v307 = vadd.f32 0.0, %v306
    %v308 = vpop.f32.mrf.mxu0
    %v309 = vpop.f32.mrf.mxu0
    %v310 = vadd.f32 0.0, %v309
    %v311 = vpop.f32.mrf.mxu0
    %312 = vdwg.mxu0
    %313 = vmatprep.subr.bf16.mxu0 0
    %314 = vmatpush1.bf16.xpose.msra.mxu0 %v206
    %315 = vmatprep.subr.bf16.mxu0 0
    %316 = vmatpush1.bf16.xpose.msra.mxu0 %v205
    %317 = vmatprep.subr.bf16.mxu0 0
    %318 = vmatpush1.bf16.xpose.msra.mxu0 %v204
    %319 = vmatprep.subr.bf16.mxu0 0
    %320 = vmatpush1.bf16.xpose.msra.mxu0 %v203
    %321 = vmatprep.subr.bf16.mxu0 0
    %322 = vmatpush1.bf16.xpose.msra.mxu0 %v202
    %323 = vmatprep.subr.bf16.mxu0 0
    %324 = vmatpush1.bf16.xpose.msra.mxu0 %v201
    %325 = vmatprep.subr.bf16.mxu0 0
    %326 = vmatpush1.bf16.xpose.msra.mxu0 %v200
    %327 = vmatprep.subr.bf16.mxu0 0
    %328 = vmatpush1.bf16.xpose.msra.mxu0 %v199
    %329 = vmatprep.subr.bf16.mxu0 0
    %330 = vmatpush2.bf16.xpose.msra.mxu0 0
    %331 = vmatprep.subr.bf16.mxu0 0
    %332 = vmatpush2.bf16.xpose.msra.mxu0 0
    %333 = vmatprep.subr.bf16.mxu0 0
    %334 = vmatpush2.bf16.xpose.msra.mxu0 0
    %335 = vmatprep.subr.bf16.mxu0 0
    %336 = vmatpush2.bf16.xpose.msra.mxu0 0
    %337 = vmatprep.subr.bf16.mxu0 0
    %338 = vmatpush2.bf16.xpose.msra.mxu0 0
    %339 = vmatprep.subr.bf16.mxu0 0
    %340 = vmatpush2.bf16.xpose.msra.mxu0 0
    %341 = vmatprep.subr.bf16.mxu0 0
    %342 = vmatpush2.bf16.xpose.msra.mxu0 0
    %343 = vmatprep.subr.bf16.mxu0 0
    %344 = vmatpush2.bf16.xpose.msra.mxu0 0
    %345 = vmatprep.mubr.bf16.mxu0 0
    %346 = vmatmul.mubr.bf16.gmra.mxu0 %v179
    %v347 = vpop.f32.mrf.mxu0
    %v348 = vadd.f32 0.0, %v347
    %v349 = vpop.f32.mrf.mxu0
    %v350 = vpop.f32.mrf.mxu0
    %v351 = vadd.f32 0.0, %v350
    %v352 = vpop.f32.mrf.mxu0
    %353 = vmatprep.mubr.bf16.mxu0 0
    %354 = vmatmul.mubr.bf16.gmra.mxu0 %v180
    %v355 = vpop.f32.mrf.mxu0
    %v356 = vadd.f32 0.0, %v355
    %v357 = vpop.f32.mrf.mxu0
    %v358 = vpop.f32.mrf.mxu0
    %v359 = vadd.f32 0.0, %v358
    %v360 = vpop.f32.mrf.mxu0
    %361 = vdwg.mxu0
    %362 = vmatprep.subr.bf16.mxu0 0
    %363 = vmatpush1.bf16.xpose.msra.mxu0 %v214
    %364 = vmatprep.subr.bf16.mxu0 0
    %365 = vmatpush1.bf16.xpose.msra.mxu0 %v213
    %366 = vmatprep.subr.bf16.mxu0 0
    %367 = vmatpush1.bf16.xpose.msra.mxu0 %v212
    %368 = vmatprep.subr.bf16.mxu0 0
    %369 = vmatpush1.bf16.xpose.msra.mxu0 %v211
    %370 = vmatprep.subr.bf16.mxu0 0
    %371 = vmatpush1.bf16.xpose.msra.mxu0 %v210
    %372 = vmatprep.subr.bf16.mxu0 0
    %373 = vmatpush1.bf16.xpose.msra.mxu0 %v209
    %374 = vmatprep.subr.bf16.mxu0 0
    %375 = vmatpush1.bf16.xpose.msra.mxu0 %v208
    %376 = vmatprep.subr.bf16.mxu0 0
    %377 = vmatpush1.bf16.xpose.msra.mxu0 %v207
    %378 = vmatprep.subr.bf16.mxu0 0
    %379 = vmatpush2.bf16.xpose.msra.mxu0 0
    %380 = vmatprep.subr.bf16.mxu0 0
    %381 = vmatpush2.bf16.xpose.msra.mxu0 0
    %382 = vmatprep.subr.bf16.mxu0 0
    %383 = vmatpush2.bf16.xpose.msra.mxu0 0
    %384 = vmatprep.subr.bf16.mxu0 0
    %385 = vmatpush2.bf16.xpose.msra.mxu0 0
    %386 = vmatprep.subr.bf16.mxu0 0
    %387 = vmatpush2.bf16.xpose.msra.mxu0 0
    %388 = vmatprep.subr.bf16.mxu0 0
    %389 = vmatpush2.bf16.xpose.msra.mxu0 0
    %390 = vmatprep.subr.bf16.mxu0 0
    %391 = vmatpush2.bf16.xpose.msra.mxu0 0
    %392 = vmatprep.subr.bf16.mxu0 0
    %393 = vmatpush2.bf16.xpose.msra.mxu0 0
    %394 = vmatprep.mubr.bf16.mxu0 0
    %395 = vmatmul.mubr.bf16.gmra.mxu0 %v181
    %v396 = vpop.f32.mrf.mxu0
    %v397 = vadd.f32 0.0, %v396
    %v398 = vpop.f32.mrf.mxu0
    %v399 = vpop.f32.mrf.mxu0
    %v400 = vadd.f32 0.0, %v399
    %v401 = vpop.f32.mrf.mxu0
    %402 = vmatprep.mubr.bf16.mxu0 0
    %403 = vmatmul.mubr.bf16.gmra.mxu0 %v182
    %v404 = vpop.f32.mrf.mxu0
    %v405 = vadd.f32 0.0, %v404
    %v406 = vpop.f32.mrf.mxu0
    %v407 = vpop.f32.mrf.mxu0
    %v408 = vadd.f32 0.0, %v407
    %v409 = vpop.f32.mrf.mxu0
    %410 = vdwg.mxu0
    %v411 = vld [vmem:[#allocation8] sm:$0xff]
    %v412 = vld [vmem:[#allocation8 + $0x8] sm:$0xff]
    %v413 = vld [vmem:[#allocation8 + $0x10] sm:$0xff]
    %v414 = vld [vmem:[#allocation8 + $0x18] sm:$0xff]
    %vm415 = vnez %v411
    %vm416 = vnez %v412
    %vm417 = vnez %v413
    %vm418 = vnez %v414
    %v419 = vsel %vm415, 16843009, 0
    %v420 = vsel %vm416, 16843009, 0
    %v421 = vsel %vm417, 16843009, 0
    %v422 = vsel %vm418, 16843009, 0
    %v423 = vunpack.c.0.s8 %v419
    %v424 = vunpack.c.1.s8 %v419
    %v425 = vunpack.c.2.s8 %v419
    %v426 = vunpack.c.3.s8 %v419
    %v427 = vunpack.c.0.s8 %v420
    %v428 = vunpack.c.1.s8 %v420
    %v429 = vunpack.c.2.s8 %v420
    %v430 = vunpack.c.3.s8 %v420
    %v431 = vunpack.c.0.s8 %v421
    %v432 = vunpack.c.1.s8 %v421
    %v433 = vunpack.c.2.s8 %v421
    %v434 = vunpack.c.3.s8 %v421
    %v435 = vunpack.c.0.s8 %v422
    %v436 = vunpack.c.1.s8 %v422
    %v437 = vunpack.c.2.s8 %v422
    %v438 = vunpack.c.3.s8 %v422
    %v439 = vpack.c.b16 %v423, %v423
    %v440 = vpack.c.b8 %v439, %v439
    %v441 = vpack.c.b16 %v424, %v424
    %v442 = vpack.c.b8 %v441, %v441
    %v443 = vpack.c.b16 %v425, %v425
    %v444 = vpack.c.b8 %v443, %v443
    %v445 = vpack.c.b16 %v426, %v426
    %v446 = vpack.c.b8 %v445, %v445
    %v447 = vpack.c.b16 %v427, %v427
    %v448 = vpack.c.b8 %v447, %v447
    %v449 = vpack.c.b16 %v428, %v428
    %v450 = vpack.c.b8 %v449, %v449
    %v451 = vpack.c.b16 %v429, %v429
    %v452 = vpack.c.b8 %v451, %v451
    %v453 = vpack.c.b16 %v430, %v430
    %v454 = vpack.c.b8 %v453, %v453
    %v455 = vpack.c.b16 %v431, %v431
    %v456 = vpack.c.b8 %v455, %v455
    %v457 = vpack.c.b16 %v432, %v432
    %v458 = vpack.c.b8 %v457, %v457
    %v459 = vpack.c.b16 %v433, %v433
    %v460 = vpack.c.b8 %v459, %v459
    %v461 = vpack.c.b16 %v434, %v434
    %v462 = vpack.c.b8 %v461, %v461
    %v463 = vpack.c.b16 %v435, %v435
    %v464 = vpack.c.b8 %v463, %v463
    %v465 = vpack.c.b16 %v436, %v436
    %v466 = vpack.c.b8 %v465, %v465
    %v467 = vpack.c.b16 %v437, %v437
    %v468 = vpack.c.b8 %v467, %v467
    %v469 = vpack.c.b16 %v438, %v438
    %v470 = vpack.c.b8 %v469, %v469
    %vm471 = vnez %v440
    %vm472 = vnez %v442
    %vm473 = vnez %v444
    %vm474 = vnez %v446
    %vm475 = vnez %v448
    %vm476 = vnez %v450
    %vm477 = vnez %v452
    %vm478 = vnez %v454
    %vm479 = vnez %v456
    %vm480 = vnez %v458
    %vm481 = vnez %v460
    %vm482 = vnez %v462
    %vm483 = vnez %v464
    %vm484 = vnez %v466
    %vm485 = vnez %v468
    %vm486 = vnez %v470
    %v487 = vsel %vm471, 16843009, 0
    %v488 = vsel %vm472, 16843009, 0
    %v489 = vsel %vm473, 16843009, 0
    %v490 = vsel %vm474, 16843009, 0
    %v491 = vsel %vm475, 16843009, 0
    %v492 = vsel %vm476, 16843009, 0
    %v493 = vsel %vm477, 16843009, 0
    %v494 = vsel %vm478, 16843009, 0
    %v495 = vsel %vm479, 16843009, 0
    %v496 = vsel %vm480, 16843009, 0
    %v497 = vsel %vm481, 16843009, 0
    %v498 = vsel %vm482, 16843009, 0
    %v499 = vsel %vm483, 16843009, 0
    %v500 = vsel %vm484, 16843009, 0
    %v501 = vsel %vm485, 16843009, 0
    %v502 = vsel %vm486, 16843009, 0
    %v503 = vunpack.c.0.s8 %v487
    %v504 = vunpack.c.0.s8 %v488
    %v505 = vunpack.c.0.s8 %v489
    %v506 = vunpack.c.0.s8 %v490
    %v507 = vunpack.c.0.s8 %v491
    %v508 = vunpack.c.0.s8 %v492
    %v509 = vunpack.c.0.s8 %v493
    %v510 = vunpack.c.0.s8 %v494
    %v511 = vunpack.c.0.s8 %v495
    %v512 = vunpack.c.0.s8 %v496
    %v513 = vunpack.c.0.s8 %v497
    %v514 = vunpack.c.0.s8 %v498
    %v515 = vunpack.c.0.s8 %v499
    %v516 = vunpack.c.0.s8 %v500
    %v517 = vunpack.c.0.s8 %v501
    %v518 = vunpack.c.0.s8 %v502
    %vm519 = vcmp.ne.s32.totalorder %v503, 0
    %vm520 = vcmp.ne.s32.totalorder %v504, 0
    %vm521 = vcmp.ne.s32.totalorder %v505, 0
    %vm522 = vcmp.ne.s32.totalorder %v506, 0
    %vm523 = vcmp.ne.s32.totalorder %v507, 0
    %vm524 = vcmp.ne.s32.totalorder %v508, 0
    %vm525 = vcmp.ne.s32.totalorder %v509, 0
    %vm526 = vcmp.ne.s32.totalorder %v510, 0
    %vm527 = vcmp.ne.s32.totalorder %v511, 0
    %vm528 = vcmp.ne.s32.totalorder %v512, 0
    %vm529 = vcmp.ne.s32.totalorder %v513, 0
    %vm530 = vcmp.ne.s32.totalorder %v514, 0
    %vm531 = vcmp.ne.s32.totalorder %v515, 0
    %vm532 = vcmp.ne.s32.totalorder %v516, 0
    %vm533 = vcmp.ne.s32.totalorder %v517, 0
    %vm534 = vcmp.ne.s32.totalorder %v518, 0
    %v535 = vsel %vm519, -1e+09, %v250
    %v536 = vsel %vm520, -1e+09, %v253
    %v537 = vsel %vm521, -1e+09, %v258
    %v538 = vsel %vm522, -1e+09, %v261
    %v539 = vsel %vm523, -1e+09, %v299
    %v540 = vsel %vm524, -1e+09, %v302
    %v541 = vsel %vm525, -1e+09, %v307
    %v542 = vsel %vm526, -1e+09, %v310
    %v543 = vsel %vm527, -1e+09, %v348
    %v544 = vsel %vm528, -1e+09, %v351
    %v545 = vsel %vm529, -1e+09, %v356
    %v546 = vsel %vm530, -1e+09, %v359
    %v547 = vsel %vm531, -1e+09, %v397
    %v548 = vsel %vm532, -1e+09, %v400
    %v549 = vsel %vm533, -1e+09, %v405
    %v550 = vsel %vm534, -1e+09, %v408
    %v551 = vlaneseq
    %v552 = vand.u32 %v551, 127
    %vm553 = vcmp.ge.s32.totalorder %v552, 8
    %v554 = vsel %vm553, -inf, %v535
    %v555 = vsel %vm553, -inf, %v536
    %v556 = vsel %vm553, -inf, %v537
    %v557 = vsel %vm553, -inf, %v538
    %v558 = vsel %vm553, -inf, %v539
    %v559 = vsel %vm553, -inf, %v540
    %v560 = vsel %vm553, -inf, %v541
    %v561 = vsel %vm553, -inf, %v542
    %v562 = vsel %vm553, -inf, %v543
    %v563 = vsel %vm553, -inf, %v544
    %v564 = vsel %vm553, -inf, %v545
    %v565 = vsel %vm553, -inf, %v546
    %v566 = vsel %vm553, -inf, %v547
    %v567 = vsel %vm553, -inf, %v548
    %v568 = vsel %vm553, -inf, %v549
    %v569 = vsel %vm553, -inf, %v550
    %570 = vmax.xlane.f32.xlu0 %v554
    %v571 = vpop.xlane.xlu0 %570
    %572 = vmax.xlane.f32.xlu0 %v555
    %v573 = vpop.xlane.xlu0 %572
    %574 = vmax.xlane.f32.xlu0 %v556
    %v575 = vpop.xlane.xlu0 %574
    %576 = vmax.xlane.f32.xlu0 %v557
    %v577 = vpop.xlane.xlu0 %576
    %578 = vmax.xlane.f32.xlu0 %v558
    %v579 = vpop.xlane.xlu0 %578
    %580 = vmax.xlane.f32.xlu0 %v559
    %v581 = vpop.xlane.xlu0 %580
    %582 = vmax.xlane.f32.xlu0 %v560
    %v583 = vpop.xlane.xlu0 %582
    %584 = vmax.xlane.f32.xlu0 %v561
    %v585 = vpop.xlane.xlu0 %584
    %586 = vmax.xlane.f32.xlu0 %v562
    %v587 = vpop.xlane.xlu0 %586
    %588 = vmax.xlane.f32.xlu0 %v563
    %v589 = vpop.xlane.xlu0 %588
    %590 = vmax.xlane.f32.xlu0 %v564
    %v591 = vpop.xlane.xlu0 %590
    %592 = vmax.xlane.f32.xlu0 %v565
    %v593 = vpop.xlane.xlu0 %592
    %594 = vmax.xlane.f32.xlu0 %v566
    %v595 = vpop.xlane.xlu0 %594
    %596 = vmax.xlane.f32.xlu0 %v567
    %v597 = vpop.xlane.xlu0 %596
    %598 = vmax.xlane.f32.xlu0 %v568
    %v599 = vpop.xlane.xlu0 %598
    %600 = vmax.xlane.f32.xlu0 %v569
    %v601 = vpop.xlane.xlu0 %600
    %v602 = vsub.f32 %v554, %v571
    %v603 = vsub.f32 %v555, %v573
    %v604 = vsub.f32 %v556, %v575
    %v605 = vsub.f32 %v557, %v577
    %v606 = vsub.f32 %v558, %v579
    %v607 = vsub.f32 %v559, %v581
    %v608 = vsub.f32 %v560, %v583
    %v609 = vsub.f32 %v561, %v585
    %v610 = vsub.f32 %v562, %v587
    %v611 = vsub.f32 %v563, %v589
    %v612 = vsub.f32 %v564, %v591
    %v613 = vsub.f32 %v565, %v593
    %v614 = vsub.f32 %v566, %v595
    %v615 = vsub.f32 %v567, %v597
    %v616 = vsub.f32 %v568, %v599
    %v617 = vsub.f32 %v569, %v601
    %v618 = vmul.f32 %v602, 1.442695
    %v619 = vpow.pop %v618
    %v620 = vmul.f32 %v603, 1.442695
    %v621 = vpow.pop %v620
    %v622 = vmul.f32 %v604, 1.442695
    %v623 = vpow.pop %v622
    %v624 = vmul.f32 %v605, 1.442695
    %v625 = vpow.pop %v624
    %v626 = vmul.f32 %v606, 1.442695
    %v627 = vpow.pop %v626
    %v628 = vmul.f32 %v607, 1.442695
    %v629 = vpow.pop %v628
    %v630 = vmul.f32 %v608, 1.442695
    %v631 = vpow.pop %v630
    %v632 = vmul.f32 %v609, 1.442695
    %v633 = vpow.pop %v632
    %v634 = vmul.f32 %v610, 1.442695
    %v635 = vpow.pop %v634
    %v636 = vmul.f32 %v611, 1.442695
    %v637 = vpow.pop %v636
    %v638 = vmul.f32 %v612, 1.442695
    %v639 = vpow.pop %v638
    %v640 = vmul.f32 %v613, 1.442695
    %v641 = vpow.pop %v640
    %v642 = vmul.f32 %v614, 1.442695
    %v643 = vpow.pop %v642
    %v644 = vmul.f32 %v615, 1.442695
    %v645 = vpow.pop %v644
    %v646 = vmul.f32 %v616, 1.442695
    %v647 = vpow.pop %v646
    %v648 = vmul.f32 %v617, 1.442695
    %v649 = vpow.pop %v648
    %650 = vadd.xlane.f32.xlu0 %v619
    %v651 = vpop.xlane.xlu0 %650
    %652 = vadd.xlane.f32.xlu0 %v621
    %v653 = vpop.xlane.xlu0 %652
    %654 = vadd.xlane.f32.xlu0 %v623
    %v655 = vpop.xlane.xlu0 %654
    %656 = vadd.xlane.f32.xlu0 %v625
    %v657 = vpop.xlane.xlu0 %656
    %658 = vadd.xlane.f32.xlu0 %v627
    %v659 = vpop.xlane.xlu0 %658
    %660 = vadd.xlane.f32.xlu0 %v629
    %v661 = vpop.xlane.xlu0 %660
    %662 = vadd.xlane.f32.xlu0 %v631
    %v663 = vpop.xlane.xlu0 %662
    %664 = vadd.xlane.f32.xlu0 %v633
    %v665 = vpop.xlane.xlu0 %664
    %666 = vadd.xlane.f32.xlu0 %v635
    %v667 = vpop.xlane.xlu0 %666
    %668 = vadd.xlane.f32.xlu0 %v637
    %v669 = vpop.xlane.xlu0 %668
    %670 = vadd.xlane.f32.xlu0 %v639
    %v671 = vpop.xlane.xlu0 %670
    %672 = vadd.xlane.f32.xlu0 %v641
    %v673 = vpop.xlane.xlu0 %672
    %674 = vadd.xlane.f32.xlu0 %v643
    %v675 = vpop.xlane.xlu0 %674
    %676 = vadd.xlane.f32.xlu0 %v645
    %v677 = vpop.xlane.xlu0 %676
    %678 = vadd.xlane.f32.xlu0 %v647
    %v679 = vpop.xlane.xlu0 %678
    %680 = vadd.xlane.f32.xlu0 %v649
    %v681 = vpop.xlane.xlu0 %680
    %v682 = vrcp.pop %v651
    %v683 = vrcp.pop %v653
    %v684 = vrcp.pop %v655
    %v685 = vrcp.pop %v657
    %v686 = vrcp.pop %v659
    %v687 = vrcp.pop %v661
    %v688 = vrcp.pop %v663
    %v689 = vrcp.pop %v665
    %v690 = vrcp.pop %v667
    %v691 = vrcp.pop %v669
    %v692 = vrcp.pop %v671
    %v693 = vrcp.pop %v673
    %v694 = vrcp.pop %v675
    %v695 = vrcp.pop %v677
    %v696 = vrcp.pop %v679
    %v697 = vrcp.pop %v681
    %v698 = vmul.f32 %v619, %v682
    %v699 = vmul.f32 %v621, %v683
    %v700 = vmul.f32 %v623, %v684
    %v701 = vmul.f32 %v625, %v685
    %v702 = vmul.f32 %v627, %v686
    %v703 = vmul.f32 %v629, %v687
    %v704 = vmul.f32 %v631, %v688
    %v705 = vmul.f32 %v633, %v689
    %v706 = vmul.f32 %v635, %v690
    %v707 = vmul.f32 %v637, %v691
    %v708 = vmul.f32 %v639, %v692
    %v709 = vmul.f32 %v641, %v693
    %v710 = vmul.f32 %v643, %v694
    %v711 = vmul.f32 %v645, %v695
    %v712 = vmul.f32 %v647, %v696
    %v713 = vmul.f32 %v649, %v697
    %v714 = vld [vmem:[#allocation7] sm:$0xff]
    %v715 = vld [vmem:[#allocation7 + $0x8] sm:$0xff]
    %v716 = vld [vmem:[#allocation7 + $0x10] sm:$0xff]
    %v717 = vld [vmem:[#allocation7 + $0x18] sm:$0xff]
    %v718 = vld [vmem:[#allocation7 + $0x20] sm:$0xff]
    %v719 = vld [vmem:[#allocation7 + $0x28] sm:$0xff]
    %v720 = vld [vmem:[#allocation7 + $0x30] sm:$0xff]
    %v721 = vld [vmem:[#allocation7 + $0x38] sm:$0xff]
    %v722 = vld [vmem:[#allocation7 + $0x40] sm:$0xff]
    %v723 = vld [vmem:[#allocation7 + $0x48] sm:$0xff]
    %v724 = vld [vmem:[#allocation7 + $0x50] sm:$0xff]
    %v725 = vld [vmem:[#allocation7 + $0x58] sm:$0xff]
    %v726 = vld [vmem:[#allocation7 + $0x60] sm:$0xff]
    %v727 = vld [vmem:[#allocation7 + $0x68] sm:$0xff]
    %v728 = vld [vmem:[#allocation7 + $0x70] sm:$0xff]
    %v729 = vld [vmem:[#allocation7 + $0x78] sm:$0xff]
    %v730 = vld [vmem:[#allocation7 + $0x80] sm:$0xff]
    %v731 = vld [vmem:[#allocation7 + $0x88] sm:$0xff]
    %v732 = vld [vmem:[#allocation7 + $0x90] sm:$0xff]
    %v733 = vld [vmem:[#allocation7 + $0x98] sm:$0xff]
    %v734 = vld [vmem:[#allocation7 + $0xa0] sm:$0xff]
    %v735 = vld [vmem:[#allocation7 + $0xa8] sm:$0xff]
    %v736 = vld [vmem:[#allocation7 + $0xb0] sm:$0xff]
    %v737 = vld [vmem:[#allocation7 + $0xb8] sm:$0xff]
    %v738 = vld [vmem:[#allocation7 + $0xc0] sm:$0xff]
    %v739 = vld [vmem:[#allocation7 + $0xc8] sm:$0xff]
    %v740 = vld [vmem:[#allocation7 + $0xd0] sm:$0xff]
    %v741 = vld [vmem:[#allocation7 + $0xd8] sm:$0xff]
    %v742 = vld [vmem:[#allocation7 + $0xe0] sm:$0xff]
    %v743 = vld [vmem:[#allocation7 + $0xe8] sm:$0xff]
    %v744 = vld [vmem:[#allocation7 + $0xf0] sm:$0xff]
    %v745 = vld [vmem:[#allocation7 + $0xf8] sm:$0xff]
    %v746 = vld [vmem:[#allocation7 + $0x100] sm:$0xff]
    %v747 = vld [vmem:[#allocation7 + $0x108] sm:$0xff]
    %v748 = vld [vmem:[#allocation7 + $0x110] sm:$0xff]
    %v749 = vld [vmem:[#allocation7 + $0x118] sm:$0xff]
    %v750 = vld [vmem:[#allocation7 + $0x120] sm:$0xff]
    %v751 = vld [vmem:[#allocation7 + $0x128] sm:$0xff]
    %v752 = vld [vmem:[#allocation7 + $0x130] sm:$0xff]
    %v753 = vld [vmem:[#allocation7 + $0x138] sm:$0xff]
    %v754 = vld [vmem:[#allocation7 + $0x140] sm:$0xff]
    %v755 = vld [vmem:[#allocation7 + $0x148] sm:$0xff]
    %v756 = vld [vmem:[#allocation7 + $0x150] sm:$0xff]
    %v757 = vld [vmem:[#allocation7 + $0x158] sm:$0xff]
    %v758 = vld [vmem:[#allocation7 + $0x160] sm:$0xff]
    %v759 = vld [vmem:[#allocation7 + $0x168] sm:$0xff]
    %v760 = vld [vmem:[#allocation7 + $0x170] sm:$0xff]
    %v761 = vld [vmem:[#allocation7 + $0x178] sm:$0xff]
    %v762 = vld [vmem:[#allocation7 + $0x180] sm:$0xff]
    %v763 = vld [vmem:[#allocation7 + $0x188] sm:$0xff]
    %v764 = vld [vmem:[#allocation7 + $0x190] sm:$0xff]
    %v765 = vld [vmem:[#allocation7 + $0x198] sm:$0xff]
    %v766 = vld [vmem:[#allocation7 + $0x1a0] sm:$0xff]
    %v767 = vld [vmem:[#allocation7 + $0x1a8] sm:$0xff]
    %v768 = vld [vmem:[#allocation7 + $0x1b0] sm:$0xff]
    %v769 = vld [vmem:[#allocation7 + $0x1b8] sm:$0xff]
    %v770 = vld [vmem:[#allocation7 + $0x1c0] sm:$0xff]
    %v771 = vld [vmem:[#allocation7 + $0x1c8] sm:$0xff]
    %v772 = vld [vmem:[#allocation7 + $0x1d0] sm:$0xff]
    %v773 = vld [vmem:[#allocation7 + $0x1d8] sm:$0xff]
    %v774 = vld [vmem:[#allocation7 + $0x1e0] sm:$0xff]
    %v775 = vld [vmem:[#allocation7 + $0x1e8] sm:$0xff]
    %v776 = vld [vmem:[#allocation7 + $0x1f0] sm:$0xff]
    %v777 = vld [vmem:[#allocation7 + $0x1f8] sm:$0xff]
    %v778 = vpack.c.bf16 %v699, %v698
    %v779 = vpack.c.bf16 %v701, %v700
    %v780 = vpack.c.bf16 %v703, %v702
    %v781 = vpack.c.bf16 %v705, %v704
    %v782 = vpack.c.bf16 %v707, %v706
    %v783 = vpack.c.bf16 %v709, %v708
    %v784 = vpack.c.bf16 %v711, %v710
    %v785 = vpack.c.bf16 %v713, %v712
    %v786 = vpack.c.bf16 %v715, %v714
    %v787 = vpack.c.bf16 %v717, %v716
    %v788 = vpack.c.bf16 %v719, %v718
    %v789 = vpack.c.bf16 %v721, %v720
    %v790 = vpack.c.bf16 %v723, %v722
    %v791 = vpack.c.bf16 %v725, %v724
    %v792 = vpack.c.bf16 %v727, %v726
    %v793 = vpack.c.bf16 %v729, %v728
    %v794 = vpack.c.bf16 %v731, %v730
    %v795 = vpack.c.bf16 %v733, %v732
    %v796 = vpack.c.bf16 %v735, %v734
    %v797 = vpack.c.bf16 %v737, %v736
    %v798 = vpack.c.bf16 %v739, %v738
    %v799 = vpack.c.bf16 %v741, %v740
    %v800 = vpack.c.bf16 %v743, %v742
    %v801 = vpack.c.bf16 %v745, %v744
    %v802 = vpack.c.bf16 %v747, %v746
    %v803 = vpack.c.bf16 %v749, %v748
    %v804 = vpack.c.bf16 %v751, %v750
    %v805 = vpack.c.bf16 %v753, %v752
    %v806 = vpack.c.bf16 %v755, %v754
    %v807 = vpack.c.bf16 %v757, %v756
    %v808 = vpack.c.bf16 %v759, %v758
    %v809 = vpack.c.bf16 %v761, %v760
    %v810 = vpack.c.bf16 %v763, %v762
    %v811 = vpack.c.bf16 %v765, %v764
    %v812 = vpack.c.bf16 %v767, %v766
    %v813 = vpack.c.bf16 %v769, %v768
    %v814 = vpack.c.bf16 %v771, %v770
    %v815 = vpack.c.bf16 %v773, %v772
    %v816 = vpack.c.bf16 %v775, %v774
    %v817 = vpack.c.bf16 %v777, %v776
    %818 = vmatprep.subr.bf16.mxu0 0
    %819 = vmatpush1.bf16.msra.mxu0 %v793
    %820 = vmatprep.subr.bf16.mxu0 0
    %821 = vmatpush1.bf16.msra.mxu0 %v792
    %822 = vmatprep.subr.bf16.mxu0 0
    %823 = vmatpush1.bf16.msra.mxu0 %v791
    %824 = vmatprep.subr.bf16.mxu0 0
    %825 = vmatpush1.bf16.msra.mxu0 %v790
    %826 = vmatprep.subr.bf16.mxu0 0
    %827 = vmatpush1.bf16.msra.mxu0 %v789
    %828 = vmatprep.subr.bf16.mxu0 0
    %829 = vmatpush1.bf16.msra.mxu0 %v788
    %830 = vmatprep.subr.bf16.mxu0 0
    %831 = vmatpush1.bf16.msra.mxu0 %v787
    %832 = vmatprep.subr.bf16.mxu0 0
    %833 = vmatpush1.bf16.msra.mxu0 %v786
    %834 = vmatprep.subr.bf16.mxu0 0
    %835 = vmatpush2.bf16.msra.mxu0 0
    %836 = vmatprep.subr.bf16.mxu0 0
    %837 = vmatpush2.bf16.msra.mxu0 0
    %838 = vmatprep.subr.bf16.mxu0 0
    %839 = vmatpush2.bf16.msra.mxu0 0
    %840 = vmatprep.subr.bf16.mxu0 0
    %841 = vmatpush2.bf16.msra.mxu0 0
    %842 = vmatprep.subr.bf16.mxu0 0
    %843 = vmatpush2.bf16.msra.mxu0 0
    %844 = vmatprep.subr.bf16.mxu0 0
    %845 = vmatpush2.bf16.msra.mxu0 0
    %846 = vmatprep.subr.bf16.mxu0 0
    %847 = vmatpush2.bf16.msra.mxu0 0
    %848 = vmatprep.subr.bf16.mxu0 0
    %849 = vmatpush2.bf16.msra.mxu0 0
    %850 = vmatprep.mubr.bf16.mxu0 0
    %851 = vmatmul.mubr.bf16.gmra.mxu0 %v778
    %v852 = vpop.f32.mrf.mxu0
    %v853 = vadd.f32 0.0, %v852
    %v854 = vpop.f32.mrf.mxu0
    %v855 = vpop.f32.mrf.mxu0
    %v856 = vadd.f32 0.0, %v855
    %v857 = vpop.f32.mrf.mxu0
    %858 = vmatprep.mubr.bf16.mxu0 0
    %859 = vmatmul.mubr.bf16.gmra.mxu0 %v779
    %v860 = vpop.f32.mrf.mxu0
    %v861 = vadd.f32 0.0, %v860
    %v862 = vpop.f32.mrf.mxu0
    %v863 = vpop.f32.mrf.mxu0
    %v864 = vadd.f32 0.0, %v863
    %v865 = vpop.f32.mrf.mxu0
    %866 = vdwg.mxu0
    %867 = vmatprep.subr.bf16.mxu0 0
    %868 = vmatpush1.bf16.msra.mxu0 %v801
    %869 = vmatprep.subr.bf16.mxu0 0
    %870 = vmatpush1.bf16.msra.mxu0 %v800
    %871 = vmatprep.subr.bf16.mxu0 0
    %872 = vmatpush1.bf16.msra.mxu0 %v799
    %873 = vmatprep.subr.bf16.mxu0 0
    %874 = vmatpush1.bf16.msra.mxu0 %v798
    %875 = vmatprep.subr.bf16.mxu0 0
    %876 = vmatpush1.bf16.msra.mxu0 %v797
    %877 = vmatprep.subr.bf16.mxu0 0
    %878 = vmatpush1.bf16.msra.mxu0 %v796
    %879 = vmatprep.subr.bf16.mxu0 0
    %880 = vmatpush1.bf16.msra.mxu0 %v795
    %881 = vmatprep.subr.bf16.mxu0 0
    %882 = vmatpush1.bf16.msra.mxu0 %v794
    %883 = vmatprep.subr.bf16.mxu0 0
    %884 = vmatpush2.bf16.msra.mxu0 0
    %885 = vmatprep.subr.bf16.mxu0 0
    %886 = vmatpush2.bf16.msra.mxu0 0
    %887 = vmatprep.subr.bf16.mxu0 0
    %888 = vmatpush2.bf16.msra.mxu0 0
    %889 = vmatprep.subr.bf16.mxu0 0
    %890 = vmatpush2.bf16.msra.mxu0 0
    %891 = vmatprep.subr.bf16.mxu0 0
    %892 = vmatpush2.bf16.msra.mxu0 0
    %893 = vmatprep.subr.bf16.mxu0 0
    %894 = vmatpush2.bf16.msra.mxu0 0
    %895 = vmatprep.subr.bf16.mxu0 0
    %896 = vmatpush2.bf16.msra.mxu0 0
    %897 = vmatprep.subr.bf16.mxu0 0
    %898 = vmatpush2.bf16.msra.mxu0 0
    %899 = vmatprep.mubr.bf16.mxu0 0
    %900 = vmatmul.mubr.bf16.gmra.mxu0 %v780
    %v901 = vpop.f32.mrf.mxu0
    %v902 = vadd.f32 0.0, %v901
    %v903 = vpop.f32.mrf.mxu0
    %v904 = vpop.f32.mrf.mxu0
    %v905 = vadd.f32 0.0, %v904
    %v906 = vpop.f32.mrf.mxu0
    %907 = vmatprep.mubr.bf16.mxu0 0
    %908 = vmatmul.mubr.bf16.gmra.mxu0 %v781
    %v909 = vpop.f32.mrf.mxu0
    %v910 = vadd.f32 0.0, %v909
    %v911 = vpop.f32.mrf.mxu0
    %v912 = vpop.f32.mrf.mxu0
    %v913 = vadd.f32 0.0, %v912
    %v914 = vpop.f32.mrf.mxu0
    %915 = vdwg.mxu0
    %916 = vmatprep.subr.bf16.mxu0 0
    %917 = vmatpush1.bf16.msra.mxu0 %v809
    %918 = vmatprep.subr.bf16.mxu0 0
    %919 = vmatpush1.bf16.msra.mxu0 %v808
    %920 = vmatprep.subr.bf16.mxu0 0
    %921 = vmatpush1.bf16.msra.mxu0 %v807
    %922 = vmatprep.subr.bf16.mxu0 0
    %923 = vmatpush1.bf16.msra.mxu0 %v806
    %924 = vmatprep.subr.bf16.mxu0 0
    %925 = vmatpush1.bf16.msra.mxu0 %v805
    %926 = vmatprep.subr.bf16.mxu0 0
    %927 = vmatpush1.bf16.msra.mxu0 %v804
    %928 = vmatprep.subr.bf16.mxu0 0
    %929 = vmatpush1.bf16.msra.mxu0 %v803
    %930 = vmatprep.subr.bf16.mxu0 0
    %931 = vmatpush1.bf16.msra.mxu0 %v802
    %932 = vmatprep.subr.bf16.mxu0 0
    %933 = vmatpush2.bf16.msra.mxu0 0
    %934 = vmatprep.subr.bf16.mxu0 0
    %935 = vmatpush2.bf16.msra.mxu0 0
    %936 = vmatprep.subr.bf16.mxu0 0
    %937 = vmatpush2.bf16.msra.mxu0 0
    %938 = vmatprep.subr.bf16.mxu0 0
    %939 = vmatpush2.bf16.msra.mxu0 0
    %940 = vmatprep.subr.bf16.mxu0 0
    %941 = vmatpush2.bf16.msra.mxu0 0
    %942 = vmatprep.subr.bf16.mxu0 0
    %943 = vmatpush2.bf16.msra.mxu0 0
    %944 = vmatprep.subr.bf16.mxu0 0
    %945 = vmatpush2.bf16.msra.mxu0 0
    %946 = vmatprep.subr.bf16.mxu0 0
    %947 = vmatpush2.bf16.msra.mxu0 0
    %948 = vmatprep.mubr.bf16.mxu0 0
    %949 = vmatmul.mubr.bf16.gmra.mxu0 %v782
    %v950 = vpop.f32.mrf.mxu0
    %v951 = vadd.f32 0.0, %v950
    %v952 = vpop.f32.mrf.mxu0
    %v953 = vpop.f32.mrf.mxu0
    %v954 = vadd.f32 0.0, %v953
    %v955 = vpop.f32.mrf.mxu0
    %956 = vmatprep.mubr.bf16.mxu0 0
    %957 = vmatmul.mubr.bf16.gmra.mxu0 %v783
    %v958 = vpop.f32.mrf.mxu0
    %v959 = vadd.f32 0.0, %v958
    %v960 = vpop.f32.mrf.mxu0
    %v961 = vpop.f32.mrf.mxu0
    %v962 = vadd.f32 0.0, %v961
    %v963 = vpop.f32.mrf.mxu0
    %964 = vdwg.mxu0
    %965 = vmatprep.subr.bf16.mxu0 0
    %966 = vmatpush1.bf16.msra.mxu0 %v817
    %967 = vmatprep.subr.bf16.mxu0 0
    %968 = vmatpush1.bf16.msra.mxu0 %v816
    %969 = vmatprep.subr.bf16.mxu0 0
    %970 = vmatpush1.bf16.msra.mxu0 %v815
    %971 = vmatprep.subr.bf16.mxu0 0
    %972 = vmatpush1.bf16.msra.mxu0 %v814
    %973 = vmatprep.subr.bf16.mxu0 0
    %974 = vmatpush1.bf16.msra.mxu0 %v813
    %975 = vmatprep.subr.bf16.mxu0 0
    %976 = vmatpush1.bf16.msra.mxu0 %v812
    %977 = vmatprep.subr.bf16.mxu0 0
    %978 = vmatpush1.bf16.msra.mxu0 %v811
    %979 = vmatprep.subr.bf16.mxu0 0
    %980 = vmatpush1.bf16.msra.mxu0 %v810
    %981 = vmatprep.subr.bf16.mxu0 0
    %982 = vmatpush2.bf16.msra.mxu0 0
    %983 = vmatprep.subr.bf16.mxu0 0
    %984 = vmatpush2.bf16.msra.mxu0 0
    %985 = vmatprep.subr.bf16.mxu0 0
    %986 = vmatpush2.bf16.msra.mxu0 0
    %987 = vmatprep.subr.bf16.mxu0 0
    %988 = vmatpush2.bf16.msra.mxu0 0
    %989 = vmatprep.subr.bf16.mxu0 0
    %990 = vmatpush2.bf16.msra.mxu0 0
    %991 = vmatprep.subr.bf16.mxu0 0
    %992 = vmatpush2.bf16.msra.mxu0 0
    %993 = vmatprep.subr.bf16.mxu0 0
    %994 = vmatpush2.bf16.msra.mxu0 0
    %995 = vmatprep.subr.bf16.mxu0 0
    %996 = vmatpush2.bf16.msra.mxu0 0
    %997 = vmatprep.mubr.bf16.mxu0 0
    %998 = vmatmul.mubr.bf16.gmra.mxu0 %v784
    %v999 = vpop.f32.mrf.mxu0
    %v1000 = vadd.f32 0.0, %v999
    %v1001 = vpop.f32.mrf.mxu0
    %v1002 = vpop.f32.mrf.mxu0
    %v1003 = vadd.f32 0.0, %v1002
    %v1004 = vpop.f32.mrf.mxu0
    %1005 = vmatprep.mubr.bf16.mxu0 0
    %1006 = vmatmul.mubr.bf16.gmra.mxu0 %v785
    %v1007 = vpop.f32.mrf.mxu0
    %v1008 = vadd.f32 0.0, %v1007
    %v1009 = vpop.f32.mrf.mxu0
    %v1010 = vpop.f32.mrf.mxu0
    %v1011 = vadd.f32 0.0, %v1010
    %v1012 = vpop.f32.mrf.mxu0
    %1013 = vdwg.mxu0
    %1014 = vst [vmem:[#allocation11] sm:$0xff] %v698
    %1015 = vst [vmem:[#allocation11 + $0x8] sm:$0xff] %v699
    %1016 = vst [vmem:[#allocation11 + $0x10] sm:$0xff] %v700
    %1017 = vst [vmem:[#allocation11 + $0x18] sm:$0xff] %v701
    %1018 = vst [vmem:[#allocation11 + $0x20] sm:$0xff] %v702
    %1019 = vst [vmem:[#allocation11 + $0x28] sm:$0xff] %v703
    %1020 = vst [vmem:[#allocation11 + $0x30] sm:$0xff] %v704
    %1021 = vst [vmem:[#allocation11 + $0x38] sm:$0xff] %v705
    %1022 = vst [vmem:[#allocation11 + $0x40] sm:$0xff] %v706
    %1023 = vst [vmem:[#allocation11 + $0x48] sm:$0xff] %v707
    %1024 = vst [vmem:[#allocation11 + $0x50] sm:$0xff] %v708
    %1025 = vst [vmem:[#allocation11 + $0x58] sm:$0xff] %v709
    %1026 = vst [vmem:[#allocation11 + $0x60] sm:$0xff] %v710
    %1027 = vst [vmem:[#allocation11 + $0x68] sm:$0xff] %v711
    %1028 = vst [vmem:[#allocation11 + $0x70] sm:$0xff] %v712
    %1029 = vst [vmem:[#allocation11 + $0x78] sm:$0xff] %v713
    %1030 = vst [vmem:[#allocation10] sm:$0xff] %v853
    %1031 = vst [vmem:[#allocation10 + $0x8] sm:$0xff] %v856
    %1032 = vst [vmem:[#allocation10 + $0x10] sm:$0xff] %v861
    %1033 = vst [vmem:[#allocation10 + $0x18] sm:$0xff] %v864
    %1034 = vst [vmem:[#allocation10 + $0x20] sm:$0xff] %v902
    %1035 = vst [vmem:[#allocation10 + $0x28] sm:$0xff] %v905
    %1036 = vst [vmem:[#allocation10 + $0x30] sm:$0xff] %v910
    %1037 = vst [vmem:[#allocation10 + $0x38] sm:$0xff] %v913
    %1038 = vst [vmem:[#allocation10 + $0x40] sm:$0xff] %v951
    %1039 = vst [vmem:[#allocation10 + $0x48] sm:$0xff] %v954
    %1040 = vst [vmem:[#allocation10 + $0x50] sm:$0xff] %v959
    %1041 = vst [vmem:[#allocation10 + $0x58] sm:$0xff] %v962
    %1042 = vst [vmem:[#allocation10 + $0x60] sm:$0xff] %v1000
    %1043 = vst [vmem:[#allocation10 + $0x68] sm:$0xff] %v1003
    %1044 = vst [vmem:[#allocation10 + $0x70] sm:$0xff] %v1008
    %1045 = vst [vmem:[#allocation10 + $0x78] sm:$0xff] %v1011
    // Predicated region
    $region34: #{tpu_custom_call.1} parent=1 // pred_check
      _
    $region35: #{tpu_custom_call.1} parent=1 // pred_check_branch
      %1047 = sbr.rel (0) target = $region37
    $region36: #{tpu_custom_call.1} parent=1 // pred_region
      %s1049 = ssub.s32 2048, 2048
      %1050 = vsyncadd [#allocation4], %s1049
      %s1051 = sshll.u32 [#allocation10], 4
      %s1052 = int_to_ptr.vmem [resolvable:$true] %s1051
      %1057 = dma.vmem_to_hbm [thread:$0]  %s1052, 2048, %s4, [#allocation4], 128, 128, 8
    $region37: #{tpu_custom_call.1} parent=1 // pred_fallthru
      _
    // Predicated region
    $region38: #{tpu_custom_call.1} parent=1 // pred_check
      _
    $region39: #{tpu_custom_call.1} parent=1 // pred_check_branch
      %1059 = sbr.rel (0) target = $region41
    $region40: #{tpu_custom_call.1} parent=1 // pred_region
      %s1061 = ssub.s32 2048, 2048
      %1062 = vsyncadd [#allocation12], %s1061
      %s1063 = sshll.u32 [#allocation11], 4
      %s1064 = int_to_ptr.vmem [resolvable:$true] %s1063
      %1069 = dma.vmem_to_hbm [thread:$0]  %s1064, 2048, %s5, [#allocation12], 128, 128, 8
    $region41: #{tpu_custom_call.1} parent=1 // pred_fallthru
      _
    // Predicated region
    $region42: #{tpu_custom_call.1} parent=1 // pred_check
      _
    $region43: #{tpu_custom_call.1} parent=1 // pred_check_branch
      %1071 = sbr.rel (0) target = $region45
    $region44: #{tpu_custom_call.1} parent=1 // pred_region
      %1072 = dma.done [#allocation4], 2048
    $region45: #{tpu_custom_call.1} parent=1 // pred_fallthru
      _
    // Predicated region
    $region46: #{tpu_custom_call.1} parent=1 // pred_check
      _
    $region47: #{tpu_custom_call.1} parent=1 // pred_check_branch
      %1074 = sbr.rel (0) target = $region49
    $region48: #{tpu_custom_call.1} parent=1 // pred_region
      %1075 = dma.done [#allocation12], 2048
    $region49: #{tpu_custom_call.1} parent=1 // pred_fallthru
      _
    %1076 = vsyncpa [#allocation3], 1
    %1077 = vsyncpa [#allocation6], 1
    %1078 = vsyncpa [#allocation9], 1
    %1079 = vsyncpa [#allocation4], 1
    %1080 = vsyncpa [#allocation12], 1

</llo_original>
